<compile_context>
chip_gen: v6e
topology: v6e:2x2x1
jax: 0.10.0
libtpu: 0.0.40
codegen_flags: <defaults>
</compile_context>

<pallas_src>
import functools

import jax
import jax.numpy as jnp
from jax.experimental import pallas as pl
from jax.experimental.pallas import tpu as pltpu

ACT_DTYPE = jnp.bfloat16        # inter-kernel activation / MXU-input dtype
VMEM_LIMIT = 32 * 1024 * 1024   # explicit scoped-VMEM budget (safe v5e/v6e/v7x)
LN_EPS = 1e-6                   # matches nn.LayerNorm(eps=1e-06)


# ----------------------------------------------------------------------------
# helpers
# ----------------------------------------------------------------------------
def _divisor_tile(n, candidates):
    for t in candidates:
        if n % t == 0:
            return t
    return n  # full extent (always allowed)


def _row_tile(m):
    return _divisor_tile(m, (512, 256, 128, 64, 32, 16, 8))


def _cparams(*sem):
    return pltpu.CompilerParams(dimension_semantics=sem,
                                vmem_limit_bytes=VMEM_LIMIT)


# ----------------------------------------------------------------------------
# fused upsample (ConvTranspose2d k=2 s=2) + skip concat + 1x1 fusion conv
# ----------------------------------------------------------------------------
def _up_fuse_skip_kernel(x_ref, s_ref, wc_ref, ws_ref, b_ref, o_ref):
    acc = jnp.dot(x_ref[...], wc_ref[...], preferred_element_type=jnp.float32)
    acc += jnp.dot(s_ref[...], ws_ref[...], preferred_element_type=jnp.float32)
    o_ref[...] = (acc + b_ref[...]).astype(o_ref.dtype)


def _up_fuse_kernel(x_ref, wc_ref, b_ref, o_ref):
    acc = jnp.dot(x_ref[...], wc_ref[...], preferred_element_type=jnp.float32)
    o_ref[...] = (acc + b_ref[...]).astype(o_ref.dtype)


def upsample_fuse(x_tok, skip_grouped, w_comb, w_skip_bd, bias):
    """x_tok: (M, Cin); skip_grouped: (M, 4*Cs) or None -> (M, 4*Cout)."""
    M, Cin = x_tok.shape
    Nc = w_comb.shape[1]
    tm = _row_tile(M)
    bias2 = bias.reshape(1, Nc).astype(jnp.float32)
    if skip_grouped is None:
        return pl.pallas_call(
            _up_fuse_kernel,
            out_shape=jax.ShapeDtypeStruct((M, Nc), ACT_DTYPE),
            grid=(M // tm,),
            in_specs=[pl.BlockSpec((tm, Cin), lambda i: (i, 0)),
                      pl.BlockSpec((Cin, Nc), lambda i: (0, 0)),
                      pl.BlockSpec((1, Nc), lambda i: (0, 0))],
            out_specs=pl.BlockSpec((tm, Nc), lambda i: (i, 0)),
            compiler_params=_cparams("parallel"),
        )(x_tok, w_comb, bias2)

    Ks = skip_grouped.shape[1]
    return pl.pallas_call(
        _up_fuse_skip_kernel,
        out_shape=jax.ShapeDtypeStruct((M, Nc), ACT_DTYPE),
        grid=(M // tm,),
        in_specs=[pl.BlockSpec((tm, Cin), lambda i: (i, 0)),
                  pl.BlockSpec((tm, Ks), lambda i: (i, 0)),
                  pl.BlockSpec((Cin, Nc), lambda i: (0, 0)),
                  pl.BlockSpec((Ks, Nc), lambda i: (0, 0)),
                  pl.BlockSpec((1, Nc), lambda i: (0, 0))],
        out_specs=pl.BlockSpec((tm, Nc), lambda i: (i, 0)),
        compiler_params=_cparams("parallel"),
    )(x_tok, skip_grouped, w_comb, w_skip_bd, bias2)


# ----------------------------------------------------------------------------
# fused LayerNorm1 + Q/KV projections (attention scale folded into Q)
# ----------------------------------------------------------------------------
def _ln_qkv_kernel(x_ref, g_ref, b_ref, wq_ref, bq_ref, wkv_ref, bkv_ref,
                   q_ref, kv_ref, *, scale):
    x = x_ref[...].astype(jnp.float32)
    mu = jnp.mean(x, axis=-1, keepdims=True)
    var = jnp.mean((x - mu) ** 2, axis=-1, keepdims=True)
    h = (x - mu) * jax.lax.rsqrt(var + LN_EPS)
    h = h * g_ref[...] + b_ref[...]
    hb = h.astype(wq_ref.dtype)
    q = jnp.dot(hb, wq_ref[...], preferred_element_type=jnp.float32) + bq_ref[...]
    kv = jnp.dot(hb, wkv_ref[...], preferred_element_type=jnp.float32) + bkv_ref[...]
    q_ref[...] = (q * scale).astype(q_ref.dtype)      # 1/sqrt(dh) folded here
    kv_ref[...] = kv.astype(kv_ref.dtype)


def ln_qkv(x, ln_g, ln_b, wq, bq, wkv, bkv, scale):
    M, C = x.shape
    C2 = wkv.shape[1]
    tm = _row_tile(M)
    kern = functools.partial(_ln_qkv_kernel, scale=scale)
    return pl.pallas_call(
        kern,
        out_shape=(jax.ShapeDtypeStruct((M, C), ACT_DTYPE),
                   jax.ShapeDtypeStruct((M, C2), ACT_DTYPE)),
        grid=(M // tm,),
        in_specs=[pl.BlockSpec((tm, C), lambda i: (i, 0)),
                  pl.BlockSpec((1, C), lambda i: (0, 0)),
                  pl.BlockSpec((1, C), lambda i: (0, 0)),
                  pl.BlockSpec((C, C), lambda i: (0, 0)),
                  pl.BlockSpec((1, C), lambda i: (0, 0)),
                  pl.BlockSpec((C, C2), lambda i: (0, 0)),
                  pl.BlockSpec((1, C2), lambda i: (0, 0))],
        out_specs=(pl.BlockSpec((tm, C), lambda i: (i, 0)),
                   pl.BlockSpec((tm, C2), lambda i: (i, 0))),
        compiler_params=_cparams("parallel"),
    )(x, ln_g.reshape(1, C), ln_b.reshape(1, C),
      wq, bq.reshape(1, C), wkv, bkv.reshape(1, C2))


# ----------------------------------------------------------------------------
# flash-style attention (online softmax, kv-tiled, heads batched per step)
# ----------------------------------------------------------------------------
def _flash_kernel(q_ref, k_ref, v_ref, o_ref, m_sc, l_sc, acc_sc):
    kv_i = pl.program_id(2)

    @pl.when(kv_i == 0)
    def _():
        m_sc[...] = jnp.full(m_sc.shape, -jnp.inf, jnp.float32)
        l_sc[...] = jnp.zeros(l_sc.shape, jnp.float32)
        acc_sc[...] = jnp.zeros(acc_sc.shape, jnp.float32)

    # q is pre-scaled by 1/sqrt(dh) in the LN+QKV kernel.
    s = jnp.einsum("bqd,bkd->bqk", q_ref[...], k_ref[...],
                   preferred_element_type=jnp.float32)
    m_prev = m_sc[...]
    m_new = jnp.maximum(m_prev, jnp.max(s, axis=-1, keepdims=True))
    alpha = jnp.exp(m_prev - m_new)
    p = jnp.exp(s - m_new)
    l_sc[...] = alpha * l_sc[...] + jnp.sum(p, axis=-1, keepdims=True)
    acc_sc[...] = alpha * acc_sc[...] + jnp.einsum(
        "bqk,bkd->bqd", p.astype(v_ref.dtype), v_ref[...],
        preferred_element_type=jnp.float32)
    m_sc[...] = m_new

    @pl.when(kv_i == pl.num_programs(2) - 1)
    def _():
        o_ref[...] = (acc_sc[...] *
                      pl.reciprocal(l_sc[...], approx=True)).astype(o_ref.dtype)


def flash_attention(q, k, v):
    """q, k, v: (B*heads, N, dh); q pre-scaled. Returns (B*heads, N, dh)."""
    BH, N, dh = q.shape
    hp = _divisor_tile(BH, (8, 4, 2))         # heads batched per grid step
    tq = _divisor_tile(N, (256, 128))
    tk = _divisor_tile(N, (256, 128))
    grid = (BH // hp, N // tq, N // tk)
    q_spec = pl.BlockSpec((hp, tq, dh), lambda b, qi, ki: (b, qi, 0))
    kv_spec = pl.BlockSpec((hp, tk, dh), lambda b, qi, ki: (b, ki, 0))
    return pl.pallas_call(
        _flash_kernel,
        out_shape=jax.ShapeDtypeStruct((BH, N, dh), ACT_DTYPE),
        grid=grid,
        in_specs=[q_spec, kv_spec, kv_spec],
        out_specs=pl.BlockSpec((hp, tq, dh), lambda b, qi, ki: (b, qi, 0)),
        scratch_shapes=[pltpu.VMEM((hp, tq, 1), jnp.float32),
                        pltpu.VMEM((hp, tq, 1), jnp.float32),
                        pltpu.VMEM((hp, tq, dh), jnp.float32)],
        compiler_params=_cparams("parallel", "parallel", "arbitrary"),
    )(q, k, v)


# ----------------------------------------------------------------------------
# fused output projection + residual add
# ----------------------------------------------------------------------------
def _proj_residual_kernel(o_ref, x_ref, w_ref, b_ref, out_ref):
    acc = jnp.dot(o_ref[...], w_ref[...], preferred_element_type=jnp.float32)
    acc = acc + b_ref[...] + x_ref[...].astype(jnp.float32)
    out_ref[...] = acc.astype(out_ref.dtype)


def proj_residual(o, x, w, b):
    M, C = x.shape
    tm = _row_tile(M)
    return pl.pallas_call(
        _proj_residual_kernel,
        out_shape=jax.ShapeDtypeStruct((M, C), ACT_DTYPE),
        grid=(M // tm,),
        in_specs=[pl.BlockSpec((tm, C), lambda i: (i, 0)),
                  pl.BlockSpec((tm, C), lambda i: (i, 0)),
                  pl.BlockSpec((C, C), lambda i: (0, 0)),
                  pl.BlockSpec((1, C), lambda i: (0, 0))],
        out_specs=pl.BlockSpec((tm, C), lambda i: (i, 0)),
        compiler_params=_cparams("parallel"),
    )(o, x, w, b.reshape(1, C))


# ----------------------------------------------------------------------------
# fused LayerNorm2 + MLP (fc1 -> GELU -> fc2) + residual add
# ----------------------------------------------------------------------------
def _ln_mlp_residual_kernel(x_ref, g_ref, b_ref, w1_ref, b1_ref, w2_ref, b2_ref,
                            o_ref):
    x = x_ref[...].astype(jnp.float32)
    mu = jnp.mean(x, axis=-1, keepdims=True)
    var = jnp.mean((x - mu) ** 2, axis=-1, keepdims=True)
    h = (x - mu) * jax.lax.rsqrt(var + LN_EPS)
    h = h * g_ref[...] + b_ref[...]
    a = jnp.dot(h.astype(w1_ref.dtype), w1_ref[...],
                preferred_element_type=jnp.float32) + b1_ref[...]
    a = jax.nn.gelu(a, approximate=False)          # exact GELU (nn.GELU default)
    m = jnp.dot(a.astype(w2_ref.dtype), w2_ref[...],
                preferred_element_type=jnp.float32) + b2_ref[...]
    o_ref[...] = (x + m).astype(o_ref.dtype)


def ln_mlp_residual(x, ln_g, ln_b, w1, b1, w2, b2):
    M, C = x.shape
    Hd = w1.shape[1]
    tm = _row_tile(M)
    return pl.pallas_call(
        _ln_mlp_residual_kernel,
        out_shape=jax.ShapeDtypeStruct((M, C), ACT_DTYPE),
        grid=(M // tm,),
        in_specs=[pl.BlockSpec((tm, C), lambda i: (i, 0)),
                  pl.BlockSpec((1, C), lambda i: (0, 0)),
                  pl.BlockSpec((1, C), lambda i: (0, 0)),
                  pl.BlockSpec((C, Hd), lambda i: (0, 0)),
                  pl.BlockSpec((1, Hd), lambda i: (0, 0)),
                  pl.BlockSpec((Hd, C), lambda i: (0, 0)),
                  pl.BlockSpec((1, C), lambda i: (0, 0))],
        out_specs=pl.BlockSpec((tm, C), lambda i: (i, 0)),
        compiler_params=_cparams("parallel"),
    )(x, ln_g.reshape(1, C), ln_b.reshape(1, C),
      w1, b1.reshape(1, Hd), w2, b2.reshape(1, C))


# ----------------------------------------------------------------------------
# parameter init (deterministic, in-script) + weight pre-composition
# ----------------------------------------------------------------------------
def _linear_init(key, fan_in, fan_out):
    w = jax.random.normal(key, (fan_in, fan_out), jnp.float32) * 0.02
    b = jnp.zeros((fan_out,), jnp.float32)
    return w, b


def init_decoder_params(key, in_ch, skip_ch, out_ch, num_blocks, mlp_ratio):
    keys = iter(jax.random.split(key, 4 + 8 * num_blocks))
    p = {}

    # ConvTranspose2d(in_ch, out_ch, k=2, s=2): torch weight (in_ch, out_ch, 2, 2)
    w_up = jax.random.normal(next(keys), (in_ch, out_ch, 2, 2), jnp.float32) * 0.02
    b_up = jnp.zeros((out_ch,), jnp.float32)

    # fusion 1x1 conv: torch weight (out_ch, out_ch + skip_ch, 1, 1)
    cin_tot = out_ch + skip_ch if skip_ch > 0 else out_ch
    w_f = jax.random.normal(next(keys), (out_ch, cin_tot), jnp.float32) * 0.02
    b_f = jnp.zeros((out_ch,), jnp.float32)
    wf_up = w_f[:, :out_ch]                         # acts on the upsampled part

    # Pre-compose upsample + fusion-main weights (pure reassociation):
    #   fuse_main(up(x)) = x @ Wcomb + bcomb
    # Wcomb[cin, (dh, dw, co)] = sum_c w_up[cin, c, dh, dw] * wf_up[co, c]
    w_comb = jnp.einsum("cohw,fo->chwf", w_up, wf_up).reshape(in_ch, 4 * out_ch)
    b_comb = jnp.tile(wf_up @ b_up + b_f, 4)        # same bias for all 4 positions
    p["up_fuse_w"] = w_comb.astype(ACT_DTYPE)
    p["up_fuse_b"] = b_comb
    if skip_ch > 0:
        wf_skip = w_f[:, out_ch:]                   # (out_ch, skip_ch)
        # block-diagonal over the 4 (dh, dw) pixel groups: (4*Cs, 4*Cout)
        p["skip_fuse_w"] = jnp.kron(jnp.eye(4, dtype=jnp.float32),
                                    wf_skip.T).astype(ACT_DTYPE)
    else:
        p["skip_fuse_w"] = None

    blocks = []
    hidden = out_ch * mlp_ratio
    for _ in range(num_blocks):
        bp = {}
        bp["ln1_g"] = jnp.ones((out_ch,), jnp.float32)
        bp["ln1_b"] = jnp.zeros((out_ch,), jnp.float32)
        wq, bq = _linear_init(next(keys), out_ch, out_ch)
        wkv, bkv = _linear_init(next(keys), out_ch, 2 * out_ch)
        wp, bpj = _linear_init(next(keys), out_ch, out_ch)
        bp["wq"], bp["bq"] = wq.astype(ACT_DTYPE), bq
        bp["wkv"], bp["bkv"] = wkv.astype(ACT_DTYPE), bkv
        bp["wproj"], bp["bproj"] = wp.astype(ACT_DTYPE), bpj
        bp["ln2_g"] = jnp.ones((out_ch,), jnp.float32)
        bp["ln2_b"] = jnp.zeros((out_ch,), jnp.float32)
        w1, b1 = _linear_init(next(keys), out_ch, hidden)
        w2, b2 = _linear_init(next(keys), hidden, out_ch)
        bp["w1"], bp["b1"] = w1.astype(ACT_DTYPE), b1
        bp["w2"], bp["b2"] = w2.astype(ACT_DTYPE), b2
        blocks.append(bp)
    p["blocks"] = blocks
    return p


# ----------------------------------------------------------------------------
# forward pass
# ----------------------------------------------------------------------------
def block_forward(bp, x, B, N, C, num_heads):
    """One transformer block on flat tokens x: (B*N, C) in ACT_DTYPE."""
    dh = C // num_heads
    M = B * N

    # fused LN1 + Q/KV projections (scale folded into q)
    q, kv = ln_qkv(x, bp["ln1_g"], bp["ln1_b"], bp["wq"], bp["bq"],
                   bp["wkv"], bp["bkv"], scale=dh ** -0.5)

    # head split (XLA layout glue)
    # TODO(synk): write head-major (B*heads, N, dh) directly from ln_qkv to drop
    # these transposes; needs a lane-aligned (128-multiple) head dim.
    q = q.reshape(B, N, num_heads, dh).transpose(0, 2, 1, 3).reshape(B * num_heads, N, dh)
    kv = kv.reshape(B, N, 2, num_heads, dh).transpose(2, 0, 3, 1, 4)
    k = kv[0].reshape(B * num_heads, N, dh)
    v = kv[1].reshape(B * num_heads, N, dh)

    o = flash_attention(q, k, v)
    o = o.reshape(B, num_heads, N, dh).transpose(0, 2, 1, 3).reshape(M, C)

    x = proj_residual(o, x, bp["wproj"], bp["bproj"])          # x + proj(attn)
    x = ln_mlp_residual(x, bp["ln2_g"], bp["ln2_b"],
                        bp["w1"], bp["b1"], bp["w2"], bp["b2"])  # x + mlp(LN2(x))
    return x
    # TODO(synk): sr_ratio > 1 KV spatial-reduction conv not implemented here.


def decoder_stage(params, x_nchw, skip_nchw, num_heads):
    B, Cin, H, W = x_nchw.shape
    Cout = params["up_fuse_b"].shape[0] // 4
    H2, W2 = 2 * H, 2 * W

    # --- ConvTranspose2d(k=2,s=2) + skip concat + 1x1 fuse conv: ONE kernel ---
    xt = x_nchw.transpose(0, 2, 3, 1).reshape(B * H * W, Cin).astype(ACT_DTYPE)
    sg = None
    if skip_nchw is not None and params["skip_fuse_w"] is not None:
        Cs = skip_nchw.shape[1]
        # TODO(synk): bilinear resize (align_corners=True) on spatial mismatch is
        # not implemented; shapes always match here.
        assert skip_nchw.shape[-2:] == (H2, W2)
        sg = (skip_nchw.transpose(0, 2, 3, 1)              # NHWC
              .reshape(B, H, 2, W, 2, Cs)
              .transpose(0, 1, 3, 2, 4, 5)                 # (B, H, W, dh, dw, Cs)
              .reshape(B * H * W, 4 * Cs).astype(ACT_DTYPE))

    y4 = upsample_fuse(xt, sg, params["up_fuse_w"], params["skip_fuse_w"],
                       params["up_fuse_b"])                 # (B*H*W, 4*Cout)

    # scatter the 2x2 pixel groups into NHWC token order (single XLA pass)
    x = (y4.reshape(B, H, W, 2, 2, Cout)
            .transpose(0, 1, 3, 2, 4, 5)                    # (B, H, dh, W, dw, C)
            .reshape(B * H2 * W2, Cout))

    N = H2 * W2
    for bp in params["blocks"]:
        x = block_forward(bp, x, B, N, Cout, num_heads)

    return (x.reshape(B, H2, W2, Cout).transpose(0, 3, 1, 2)
            .astype(jnp.float32))                           # back to NCHW, f32


# ----------------------------------------------------------------------------
# main
# ----------------------------------------------------------------------------
if __name__ == "__main__":
    key = jax.random.PRNGKey(0)
    kx, kskip, kp = jax.random.split(key, 3)

    B, Cin, H, W = 2, 8, 4, 4
    skipC, Cout = 4, 8
    num_blocks, num_heads, mlp_ratio, sr_ratio = 2, 2, 2, 1

    x = jax.random.normal(kx, (B, Cin, H, W), jnp.float32)
    skip = jax.random.normal(kskip, (B, skipC, 2 * H, 2 * W), jnp.float32)

    params = init_decoder_params(kp, Cin, skipC, Cout, num_blocks, mlp_ratio)

    out = decoder_stage(params, x, skip, num_heads)
    out = jax.block_until_ready(out)
    assert out.shape == (B, Cout, 2 * H, 2 * W), out.shape
    assert bool(jnp.all(jnp.isfinite(out)))
    print("KERNEL_OK")
</pallas_src>

<mosaic_0001>
module attributes {stable_mosaic.version = 11 : i64} {
  func.func @_up_fuse_skip_kernel(%arg0: i32, %arg1: memref<32x8xbf16, #tpu.memory_space<vmem>>, %arg2: memref<32x16xbf16, #tpu.memory_space<vmem>>, %arg3: memref<8x32xbf16, #tpu.memory_space<vmem>>, %arg4: memref<16x32xbf16, #tpu.memory_space<vmem>>, %arg5: memref<1x32xf32, #tpu.memory_space<vmem>>, %arg6: memref<32x32xbf16, #tpu.memory_space<vmem>>) attributes {dimension_semantics = [#tpu.dimension_semantics<parallel>], iteration_bounds = array<i64: 1>, scalar_prefetch = 0 : i64, scratch_operands = 0 : i64, tpu.core_type = #tpu.core_type<tc>, window_params = [{transform_indices = @transform_0, window_bounds = array<i64: 32, 8>}, {transform_indices = @transform_1, window_bounds = array<i64: 32, 16>}, {pipeline_mode = #tpu.pipeline_mode<synchronous>, transform_indices = @transform_2, window_bounds = array<i64: 8, 32>}, {pipeline_mode = #tpu.pipeline_mode<synchronous>, transform_indices = @transform_3, window_bounds = array<i64: 16, 32>}, {pipeline_mode = #tpu.pipeline_mode<synchronous>, transform_indices = @transform_4, window_bounds = array<i64: 1, 32>}, {transform_indices = @transform_5, window_bounds = array<i64: 32, 32>}]} {
    %c0 = arith.constant 0 : index
    %c0_0 = arith.constant 0 : index
    %0 = vector.load %arg1[%c0, %c0_0] : memref<32x8xbf16, #tpu.memory_space<vmem>>, vector<32x8xbf16>
    %c0_1 = arith.constant 0 : index
    %c0_2 = arith.constant 0 : index
    %1 = vector.load %arg3[%c0_1, %c0_2] : memref<8x32xbf16, #tpu.memory_space<vmem>>, vector<8x32xbf16>
    %cst = arith.constant dense<0.000000e+00> : vector<32x32xf32>
    %2 = tpu.matmul %0, %1, %cst {dimension_numbers = #tpu.dot_dimension_numbers<[1], [0], [0], [1], [0, 0, 1, 1], [], []>} : vector<32x8xbf16>, vector<8x32xbf16>, vector<32x32xf32> -> vector<32x32xf32>
    %c0_3 = arith.constant 0 : index
    %c0_4 = arith.constant 0 : index
    %3 = vector.load %arg2[%c0_3, %c0_4] : memref<32x16xbf16, #tpu.memory_space<vmem>>, vector<32x16xbf16>
    %c0_5 = arith.constant 0 : index
    %c0_6 = arith.constant 0 : index
    %4 = vector.load %arg4[%c0_5, %c0_6] : memref<16x32xbf16, #tpu.memory_space<vmem>>, vector<16x32xbf16>
    %cst_7 = arith.constant dense<0.000000e+00> : vector<32x32xf32>
    %5 = tpu.matmul %3, %4, %cst_7 {dimension_numbers = #tpu.dot_dimension_numbers<[1], [0], [0], [1], [0, 0, 1, 1], [], []>} : vector<32x16xbf16>, vector<16x32xbf16>, vector<32x32xf32> -> vector<32x32xf32>
    %6 = arith.addf %2, %5 : vector<32x32xf32>
    %c0_8 = arith.constant 0 : index
    %c0_9 = arith.constant 0 : index
    %7 = vector.load %arg5[%c0_8, %c0_9] : memref<1x32xf32, #tpu.memory_space<vmem>>, vector<1x32xf32>
    %8 = vector.broadcast %7 : vector<1x32xf32> to vector<32x32xf32>
    %9 = arith.addf %6, %8 : vector<32x32xf32>
    %10 = arith.truncf %9 : vector<32x32xf32> to vector<32x32xbf16>
    %c0_10 = arith.constant 0 : index
    %c0_11 = arith.constant 0 : index
    %11 = vector.load %arg6[%c0_10, %c0_11] : memref<32x32xbf16, #tpu.memory_space<vmem>>, vector<32x32xbf16>
    tpu.vector_store %arg6[%c0_10, %c0_11], %10 {strides = array<i32>} : memref<32x32xbf16, #tpu.memory_space<vmem>>, vector<32x32xbf16>,
    return
  }
  func.func @transform_0(%arg0: i32) -> (i32, i32) {
    %c0_i32 = arith.constant 0 : i32
    %c0_i32_0 = arith.constant 0 : i32
    return %arg0, %c0_i32 : i32, i32
  }
  func.func @transform_1(%arg0: i32) -> (i32, i32) {
    %c0_i32 = arith.constant 0 : i32
    %c0_i32_0 = arith.constant 0 : i32
    return %arg0, %c0_i32 : i32, i32
  }
  func.func @transform_2(%arg0: i32) -> (i32, i32) {
    %c0_i32 = arith.constant 0 : i32
    %c0_i32_0 = arith.constant 0 : i32
    %c0_i32_1 = arith.constant 0 : i32
    return %c0_i32, %c0_i32_0 : i32, i32
  }
  func.func @transform_3(%arg0: i32) -> (i32, i32) {
    %c0_i32 = arith.constant 0 : i32
    %c0_i32_0 = arith.constant 0 : i32
    %c0_i32_1 = arith.constant 0 : i32
    return %c0_i32, %c0_i32_0 : i32, i32
  }
  func.func @transform_4(%arg0: i32) -> (i32, i32) {
    %c0_i32 = arith.constant 0 : i32
    %c0_i32_0 = arith.constant 0 : i32
    %c0_i32_1 = arith.constant 0 : i32
    return %c0_i32, %c0_i32_0 : i32, i32
  }
  func.func @transform_5(%arg0: i32) -> (i32, i32) {
    %c0_i32 = arith.constant 0 : i32
    %c0_i32_0 = arith.constant 0 : i32
    return %arg0, %c0_i32 : i32, i32
  }
}

</mosaic_0001>

<llo_original>
// kernel: tpu_custom_call.1
$region0: #{tpu_custom_call.1}
  #allocation0 [shape = 'u32[]', space=smem, size = 0x4, offset = 0x4, fixed_abs, tag = 'smem constant byte address 0x4 - core index']
  #allocation1 [shape = 'u32[144,128]{1,0:T(1,128)}', space=vmem, size = 0x12000, scoped, tag = 'internal scratch']
  %s0 = inlined_call_operand.vmem [shape: bf16[32,8], index: 0, kind: input, shape index: {}]
  %s1 = inlined_call_operand.vmem [shape: bf16[32,16], index: 1, kind: input, shape index: {}]
  %s2 = inlined_call_operand.vmem [shape: bf16[8,32], index: 2, kind: input, shape index: {}]
  %s3 = inlined_call_operand.vmem [shape: bf16[16,32], index: 3, kind: input, shape index: {}]
  %s4 = inlined_call_operand.vmem [shape: f32[1,32], index: 4, kind: input, shape index: {}]
  %s5 = inlined_call_operand.hbm [shape: bf16[32,32], index: 5, kind: output, shape index: {}]
  %s6 = sld [smem:[#allocation0]]
  $region30: #{tpu_custom_call.1} parent=0
    _
  %s8 = ssub.s32 1, %s6
  %s9 = scalar_select 0, %s8, %s6
  $region1: #{tpu_custom_call.1} parent=0
    #allocation2 [shape = 'u8[8192]{0}', space=vmem, size = 0x2000, scoped, tag = 'output window, operand 0, single buffered']
    #allocation3 [shape = 's32[1]{0}', space=sflag, size = 0x4, scoped, tag = 'scoped memory for tpu_custom_call.1']
    %10 = vsyncpa [#allocation3], 0
    // Predicated region
    $region2: #{tpu_custom_call.1} parent=1 // pred_check
      _
    $region3: #{tpu_custom_call.1} parent=1 // pred_check_branch
      %12 = sbr.rel (0) target = $region5
    $region4: #{tpu_custom_call.1} parent=1 // pred_region
      _
    $region5: #{tpu_custom_call.1} parent=1 // pred_fallthru
      _
    // Predicated region
    $region6: #{tpu_custom_call.1} parent=1 // pred_check
      _
    $region7: #{tpu_custom_call.1} parent=1 // pred_check_branch
      %14 = sbr.rel (0) target = $region9
    $region8: #{tpu_custom_call.1} parent=1 // pred_region
      _
    $region9: #{tpu_custom_call.1} parent=1 // pred_fallthru
      _
    // Predicated region
    $region10: #{tpu_custom_call.1} parent=1 // pred_check
      _
    $region11: #{tpu_custom_call.1} parent=1 // pred_check_branch
      %16 = sbr.rel (0) target = $region13
    $region12: #{tpu_custom_call.1} parent=1 // pred_region
      _
    $region13: #{tpu_custom_call.1} parent=1 // pred_fallthru
      _
    // Predicated region
    $region14: #{tpu_custom_call.1} parent=1 // pred_check
      _
    $region15: #{tpu_custom_call.1} parent=1 // pred_check_branch
      %18 = sbr.rel (0) target = $region17
    $region16: #{tpu_custom_call.1} parent=1 // pred_region
      _
    $region17: #{tpu_custom_call.1} parent=1 // pred_fallthru
      _
    // Predicated region
    $region18: #{tpu_custom_call.1} parent=1 // pred_check
      _
    $region19: #{tpu_custom_call.1} parent=1 // pred_check_branch
      %20 = sbr.rel (0) target = $region21
    $region20: #{tpu_custom_call.1} parent=1 // pred_region
      _
    $region21: #{tpu_custom_call.1} parent=1 // pred_fallthru
      _
    %v22 = vld [vmem:[%s0] sm:$0xf]
    %v23 = vld [vmem:[%s0 + $0x4] sm:$0xf]
    %v24 = vld [vmem:[%s0 + $0x8] sm:$0xf]
    %v25 = vld [vmem:[%s0 + $0xc] sm:$0xf]
    %v26 = vld [vmem:[%s2] sm:$0xf]
    %v27 = vld [vmem:[%s1] sm:$0xf]
    %v28 = vld [vmem:[%s1 + $0x4] sm:$0xf]
    %v29 = vld [vmem:[%s1 + $0x8] sm:$0xf]
    %v30 = vld [vmem:[%s1 + $0xc] sm:$0xf]
    %v31 = vld [vmem:[%s3] sm:$0xf]
    %v32 = vld [vmem:[%s3 + $0x4] sm:$0xf]
    %v37 = vunpack.c.l.b16 %v27
    %v38 = vunpack.c.l.b16 %v28
    %v39 = vunpack.c.l.b16 %v29
    %v40 = vunpack.c.l.b16 %v30
    %v41 = vpack.c.b16 %v38, %v37
    %v42 = vpack.c.b16 %v40, %v39
    %v45 = vunpack.c.l.b16 %v31
    %v46 = vunpack.c.l.b16 %v32
    %v47 = vpack.c.b16 %v46, %v45
    %vm49 = vcmask 130048
    %v51 = vsel %vm49, %v41, 0
    %v54 = vsel %vm49, %v42, 0
    %56 = vmatprep.subr.bf16.mxu0 0
    %57 = vmatpush1.bf16.msra.mxu0 0
    %58 = vmatprep.subr.bf16.mxu0 0
    %59 = vmatpush1.bf16.msra.mxu0 0
    %60 = vmatprep.subr.bf16.mxu0 0
    %61 = vmatpush1.bf16.msra.mxu0 0
    %62 = vmatprep.subr.bf16.mxu0 0
    %63 = vmatpush1.bf16.msra.mxu0 0
    %64 = vmatprep.subr.bf16.mxu0 0
    %65 = vmatpush1.bf16.msra.mxu0 0
    %66 = vmatprep.subr.bf16.mxu0 0
    %67 = vmatpush1.bf16.msra.mxu0 0
    %68 = vmatprep.subr.bf16.mxu0 0
    %69 = vmatpush1.bf16.msra.mxu0 0
    %70 = vmatprep.subr.bf16.mxu0 0
    %71 = vmatpush1.bf16.msra.mxu0 %v47
    %72 = vmatprep.subr.bf16.mxu0 0
    %73 = vmatpush2.bf16.msra.mxu0 0
    %74 = vmatprep.subr.bf16.mxu0 0
    %75 = vmatpush2.bf16.msra.mxu0 0
    %76 = vmatprep.subr.bf16.mxu0 0
    %77 = vmatpush2.bf16.msra.mxu0 0
    %78 = vmatprep.subr.bf16.mxu0 0
    %79 = vmatpush2.bf16.msra.mxu0 0
    %80 = vmatprep.subr.bf16.mxu0 0
    %81 = vmatpush2.bf16.msra.mxu0 0
    %82 = vmatprep.subr.bf16.mxu0 0
    %83 = vmatpush2.bf16.msra.mxu0 0
    %84 = vmatprep.subr.bf16.mxu0 0
    %85 = vmatpush2.bf16.msra.mxu0 0
    %86 = vmatprep.subr.bf16.mxu0 0
    %87 = vmatpush2.bf16.msra.mxu0 0
    %88 = vmatprep.mubr.bf16.mxu0 0
    %89 = vmatmul.mubr.bf16.gmra.mxu0 %v51
    %v90 = vpop.f32.mrf.mxu0
    %v91 = vadd.f32 0.0, %v90
    %v92 = vpop.f32.mrf.mxu0
    %v93 = vpop.f32.mrf.mxu0
    %v94 = vadd.f32 0.0, %v93
    %v95 = vpop.f32.mrf.mxu0
    %96 = vmatprep.mubr.bf16.mxu0 0
    %97 = vmatmul.mubr.bf16.gmra.mxu0 %v54
    %v98 = vpop.f32.mrf.mxu0
    %v99 = vadd.f32 0.0, %v98
    %v100 = vpop.f32.mrf.mxu0
    %v101 = vpop.f32.mrf.mxu0
    %v102 = vadd.f32 0.0, %v101
    %v103 = vpop.f32.mrf.mxu0
    %104 = vdwg.mxu0
    %v109 = vunpack.c.l.b16 %v22
    %v110 = vunpack.c.l.b16 %v23
    %v111 = vunpack.c.l.b16 %v24
    %v112 = vunpack.c.l.b16 %v25
    %v113 = vpack.c.b16 %v110, %v109
    %v114 = vpack.c.b16 %v112, %v111
    %vm115 = vcmask 64512
    %v117 = vsel %vm115, %v113, 0
    %v120 = vsel %vm115, %v114, 0
    %vm122 = vcmask 1043456
    %v124 = vsel %vm122, %v26, 0
    %126 = vmatprep.subr.bf16.mxu0 0
    %127 = vmatpush1.bf16.msra.mxu0 0
    %128 = vmatprep.subr.bf16.mxu0 0
    %129 = vmatpush1.bf16.msra.mxu0 0
    %130 = vmatprep.subr.bf16.mxu0 0
    %131 = vmatpush1.bf16.msra.mxu0 0
    %132 = vmatprep.subr.bf16.mxu0 0
    %133 = vmatpush1.bf16.msra.mxu0 0
    %134 = vmatprep.subr.bf16.mxu0 0
    %135 = vmatpush1.bf16.msra.mxu0 0
    %136 = vmatprep.subr.bf16.mxu0 0
    %137 = vmatpush1.bf16.msra.mxu0 0
    %138 = vmatprep.subr.bf16.mxu0 0
    %139 = vmatpush1.bf16.msra.mxu0 0
    %140 = vmatprep.subr.bf16.mxu0 0
    %141 = vmatpush1.bf16.msra.mxu0 %v124
    %142 = vmatprep.subr.bf16.mxu0 0
    %143 = vmatpush2.bf16.msra.mxu0 0
    %144 = vmatprep.subr.bf16.mxu0 0
    %145 = vmatpush2.bf16.msra.mxu0 0
    %146 = vmatprep.subr.bf16.mxu0 0
    %147 = vmatpush2.bf16.msra.mxu0 0
    %148 = vmatprep.subr.bf16.mxu0 0
    %149 = vmatpush2.bf16.msra.mxu0 0
    %150 = vmatprep.subr.bf16.mxu0 0
    %151 = vmatpush2.bf16.msra.mxu0 0
    %152 = vmatprep.subr.bf16.mxu0 0
    %153 = vmatpush2.bf16.msra.mxu0 0
    %154 = vmatprep.subr.bf16.mxu0 0
    %155 = vmatpush2.bf16.msra.mxu0 0
    %156 = vmatprep.subr.bf16.mxu0 0
    %157 = vmatpush2.bf16.msra.mxu0 0
    %158 = vmatprep.mubr.bf16.mxu0 0
    %159 = vmatmul.mubr.bf16.gmra.mxu0 %v117
    %v160 = vpop.f32.mrf.mxu0
    %v161 = vadd.f32 %v91, %v160
    %v162 = vpop.f32.mrf.mxu0
    %v163 = vpop.f32.mrf.mxu0
    %v164 = vadd.f32 %v94, %v163
    %v165 = vpop.f32.mrf.mxu0
    %166 = vmatprep.mubr.bf16.mxu0 0
    %167 = vmatmul.mubr.bf16.gmra.mxu0 %v120
    %v168 = vpop.f32.mrf.mxu0
    %v169 = vadd.f32 %v99, %v168
    %v170 = vpop.f32.mrf.mxu0
    %v171 = vpop.f32.mrf.mxu0
    %v172 = vadd.f32 %v102, %v171
    %v173 = vpop.f32.mrf.mxu0
    %174 = vdwg.mxu0
    %v175 = vld [vmem:[%s4] sm:$0x1]
    %v177 = vlaneseq
    %v178 = vshrl.u32 %v177, 7
    %v179 = vsub.s32 0, %v178
    %v180 = vrot.slane %v175, %v179
    %v182 = vadd.f32 %v161, %v180
    %v183 = vadd.f32 %v164, %v180
    %v184 = vadd.f32 %v169, %v180
    %v185 = vadd.f32 %v172, %v180
    %v186 = vpack.c.bf16 %v183, %v182
    %v187 = vpack.c.bf16 %v185, %v184
    %v190 = vunpack.c.l.b16 %v186
    %v191 = vunpack.c.h.b16 %v186
    %v192 = vunpack.c.l.b16 %v187
    %v193 = vunpack.c.h.b16 %v187
    %v194 = vpack.c.b16 %v190, %v190
    %v195 = vpack.c.b16 %v191, %v191
    %v196 = vpack.c.b16 %v192, %v192
    %v197 = vpack.c.b16 %v193, %v193
    %vm202 = vcmask 257024
    %203 = vst.msk [vmem:[#allocation2] sm:$0xf] %vm202, %v194
    %204 = vst.msk [vmem:[#allocation2 + $0x4] sm:$0xf] %vm202, %v195
    %205 = vst.msk [vmem:[#allocation2 + $0x8] sm:$0xf] %vm202, %v196
    %206 = vst.msk [vmem:[#allocation2 + $0xc] sm:$0xf] %vm202, %v197
    // Predicated region
    $region22: #{tpu_custom_call.1} parent=1 // pred_check
      _
    $region23: #{tpu_custom_call.1} parent=1 // pred_check_branch
      %208 = sbr.rel (0) target = $region25
    $region24: #{tpu_custom_call.1} parent=1 // pred_region
      %s210 = ssub.s32 256, 256
      %211 = vsyncadd [#allocation3], %s210
      %s212 = sshll.u32 [#allocation2], 4
      %s213 = int_to_ptr.vmem [resolvable:$true] %s212
      %218 = dma.vmem_to_hbm [thread:$0]  %s213, 256, %s5, [#allocation3], 64, 64, 4
    $region25: #{tpu_custom_call.1} parent=1 // pred_fallthru
      _
    // Predicated region
    $region26: #{tpu_custom_call.1} parent=1 // pred_check
      _
    $region27: #{tpu_custom_call.1} parent=1 // pred_check_branch
      %220 = sbr.rel (0) target = $region29
    $region28: #{tpu_custom_call.1} parent=1 // pred_region
      %221 = dma.done [#allocation3], 256
    $region29: #{tpu_custom_call.1} parent=1 // pred_fallthru
      _
    %222 = vsyncpa [#allocation3], 1

</llo_original>
